<compile_context>
chip_gen: v7x
topology: tpu7x:2x2x1
jax: 0.10.0
libtpu: 0.0.40
codegen_flags: <defaults>
</compile_context>

<pallas_src>
import functools

import jax
import jax.numpy as jnp
from jax import lax
from jax.experimental import pallas as pl
from jax.experimental.pallas import tpu as pltpu

_LANES = 128
_MAX_BLOCK_ROWS = 512  # 512 * 128 * 4 B = 256 KiB per output block (v7x-safe)

# uint32 hash constants written as wrapped int32 literals (TPU vector int is 32-bit).
_GOLD = -1640531527        # 0x9E3779B9
_MIX = -2048144777         # 0x85EBCA77
_H1 = 0x7FEB352D           # lowbias32 multiplier 1 (fits in int32)
_H2 = -2073434485          # 0x846CA68B


def _round_up(x, m):
    return (x + m - 1) // m * m


def _lsr(x, k):
    """Logical right shift on int32 (arithmetic >> plus a mask)."""
    return (x >> k) & ((1 << (32 - k)) - 1)


def _hash_i32(x):
    """'lowbias32' avalanche hash on int32 lanes (wrapping mult, logical shifts)."""
    x = x ^ _lsr(x, 16)
    x = x * _H1
    x = x ^ _lsr(x, 15)
    x = x * _H2
    x = x ^ _lsr(x, 16)
    return x


def _erfinv_f32(x):
    """Single-precision erfinv (Giles 2010): only log/sqrt/mul/add/where."""
    w = -jnp.log((1.0 - x) * (1.0 + x))
    ws = w - 2.5
    p1 = jnp.float32(2.81022636e-08)
    for c in (3.43273939e-07, -3.5233877e-06, -4.39150654e-06, 0.00021858087,
              -0.00125372503, -0.00417768164, 0.246640727, 1.50140941):
        p1 = p1 * ws + jnp.float32(c)
    wb = jnp.sqrt(w) - 3.0
    p2 = jnp.float32(-0.000200214257)
    for c in (0.000100950558, 0.00134934322, -0.00367342844, 0.00573950773,
              -0.0076224613, 0.00943887047, 1.00167406, 2.83297682):
        p2 = p2 * wb + jnp.float32(c)
    return jnp.where(w < 5.0, p1, p2) * x


def _env_kernel(seed_ref, slab_ref):
    """Fill one lane-dense (block_rows, 128) f32 block with iid N(0,1) samples."""
    b = pl.program_id(0)   # env step / batch index
    r = pl.program_id(1)   # row-block index within this step's slab
    rows, lanes = slab_ref.shape

    # Per-element counter, unique across the row blocks of one step.
    row = lax.broadcasted_iota(jnp.int32, (rows, lanes), 0)
    col = lax.broadcasted_iota(jnp.int32, (rows, lanes), 1)
    lin = r * (rows * lanes) + row * lanes + col

    # Per-step stream constant from the seed and the step index.
    stream = seed_ref[b] * _GOLD + b * _MIX

    bits = _hash_i32(lin ^ stream)
    m24 = _lsr(bits, 8).astype(jnp.float32)             # uniform 24-bit integer
    x = (m24 + 0.5) * jnp.float32(2.0 ** -23) - 1.0     # uniform in (-1, 1), open
    slab_ref[...] = jnp.float32(1.4142135623730951) * _erfinv_f32(x)  # N(0, 1)


@functools.partial(jax.jit, static_argnames=("state_shape",))
def _env_step_batch(seeds, state_shape):
    c, h, w = state_shape
    n_state = c * h * w
    n_needed = n_state + 2                    # + 1 reward normal + 1 done source
    rows_needed = pl.cdiv(n_needed, _LANES)
    if rows_needed <= _MAX_BLOCK_ROWS:
        block_rows = _round_up(rows_needed, 8)
        rows_total = block_rows
    else:
        block_rows = _MAX_BLOCK_ROWS
        rows_total = _round_up(rows_needed, _MAX_BLOCK_ROWS)
    batch = seeds.shape[0]

    slab = pl.pallas_call(
        _env_kernel,
        out_shape=jax.ShapeDtypeStruct((batch, rows_total, _LANES), jnp.float32),
        grid=(batch, rows_total // block_rows),
        in_specs=[pl.BlockSpec(memory_space=pltpu.SMEM)],   # seeds: whole array in SMEM
        out_specs=pl.BlockSpec((None, block_rows, _LANES), lambda b, r: (b, r, 0)),
        compiler_params=pltpu.CompilerParams(
            dimension_semantics=("parallel", "parallel")),
    )(seeds.astype(jnp.int32))

    flat = slab.reshape(batch, rows_total * _LANES)
    state = flat[:, :n_state].reshape((batch,) + tuple(state_shape))
    reward = flat[:, n_state:n_state + 1]                               # fresh N(0,1)
    done = (flat[:, n_state + 1:n_state + 2] > 0.0).astype(jnp.int32)   # fair coin
    return state, reward, done


def env_forward(actions, seed, state_shape):
    """Pallas Env.forward -> (state [c,h,w] f32, reward [1] f32, done [1] i32)."""
    del actions  # the mock Env never reads its actions
    seeds = jnp.asarray(seed, dtype=jnp.int32).reshape(-1)[:1]
    state, reward, done = _env_step_batch(seeds, tuple(state_shape))
    # TODO(synk): torch.randint returns int64 `done`; int32 is used here (no int64 vector path on TPU).
    return state[0], reward[0], done[0]


def env_forward_batched(actions, seeds, state_shape):
    """Batched env steps: one pallas_call for all seeds (amortizes call/DMA overhead)."""
    del actions
    seeds = jnp.asarray(seeds, dtype=jnp.int32).reshape(-1)
    return _env_step_batch(seeds, tuple(state_shape))


def env_reset(seed, state_shape):
    """Pallas Env.reset -> FrameState (reuses the same kernel)."""
    state, _, _ = env_forward(jnp.zeros((1,), jnp.int32), seed, state_shape)
    return state


if __name__ == "__main__":
    key = jax.random.PRNGKey(0)
    state_shape = (4, 16, 16)  # (c, h, w)

    actions = jax.random.randint(key, (8,), 0, 5, dtype=jnp.int32)  # Int['a'] (ignored by Env)
    seed = jnp.array([0], dtype=jnp.int32)

    state, reward, done = env_forward(actions, seed, state_shape)
    jax.block_until_ready((state, reward, done))
    assert state.shape == state_shape and state.dtype == jnp.float32
    assert reward.shape == (1,) and reward.dtype == jnp.float32
    assert done.shape == (1,) and int(done[0]) in (0, 1)

    # Batched rollout: 4 env steps from a single pallas_call.
    seeds = jnp.arange(4, dtype=jnp.int32)
    bstate, breward, bdone = env_forward_batched(actions, seeds, state_shape)
    jax.block_until_ready((bstate, breward, bdone))
    assert bstate.shape == (4,) + state_shape
    assert breward.shape == (4, 1) and bdone.shape == (4, 1)
    assert not bool(jnp.allclose(bstate[0], bstate[1]))  # different seeds -> different frames

    # Loose N(0,1) sanity check over 4 * 1024 generated state values.
    m = float(jnp.mean(bstate))
    s = float(jnp.std(bstate))
    assert abs(m) < 0.2 and abs(s - 1.0) < 0.2, (m, s)

    # reset() path
    s0 = env_reset(jnp.array([1], dtype=jnp.int32), state_shape)
    jax.block_until_ready(s0)
    assert s0.shape == state_shape

    print("KERNEL_OK")
</pallas_src>

<mosaic_0001>
module attributes {stable_mosaic.version = 11 : i64} {
  func.func @_env_kernel(%arg0: i32, %arg1: i32, %arg2: memref<1xi32, #tpu.memory_space<smem>>, %arg3: memref<1x16x128xf32, #tpu.memory_space<vmem>>) attributes {dimension_semantics = [#tpu.dimension_semantics<parallel>, #tpu.dimension_semantics<parallel>], iteration_bounds = array<i64: 1, 1>, scalar_prefetch = 0 : i64, scratch_operands = 0 : i64, tpu.core_type = #tpu.core_type<tc>, window_params = [{transform_indices = @transform_0, window_bounds = array<i64: 1>}, {transform_indices = @transform_1, window_bounds = array<i64: 1, 16, 128>}]} {
    %0 = tpu.iota {dimensions = array<i32: 0>} : vector<16x128xi32>
    %1 = tpu.iota {dimensions = array<i32: 1>} : vector<16x128xi32>
    %c2048_i32 = arith.constant 2048 : i32
    %2 = arith.muli %arg1, %c2048_i32 : i32
    %c128_i32 = arith.constant 128 : i32
    %3 = vector.broadcast %c128_i32 : i32 to vector<16x128xi32>
    %4 = arith.muli %0, %3 : vector<16x128xi32>
    %5 = vector.broadcast %2 : i32 to vector<16x128xi32>
    %6 = arith.addi %5, %4 : vector<16x128xi32>
    %7 = arith.addi %6, %1 : vector<16x128xi32>
    %8 = arith.index_cast %arg0 : i32 to index
    %9 = memref.load %arg2[%8] : memref<1xi32, #tpu.memory_space<smem>>
    %c-1640531527_i32 = arith.constant -1640531527 : i32
    %10 = arith.muli %9, %c-1640531527_i32 : i32
    %c-2048144777_i32 = arith.constant -2048144777 : i32
    %11 = arith.muli %arg0, %c-2048144777_i32 : i32
    %12 = arith.addi %10, %11 : i32
    %13 = vector.broadcast %12 : i32 to vector<16x128xi32>
    %14 = arith.xori %7, %13 : vector<16x128xi32>
    %c16_i32 = arith.constant 16 : i32
    %15 = vector.broadcast %c16_i32 : i32 to vector<16x128xi32>
    %16 = arith.shrsi %14, %15 : vector<16x128xi32>
    %c65535_i32 = arith.constant 65535 : i32
    %17 = vector.broadcast %c65535_i32 : i32 to vector<16x128xi32>
    %18 = arith.andi %16, %17 : vector<16x128xi32>
    %19 = arith.xori %14, %18 : vector<16x128xi32>
    %c2146121005_i32 = arith.constant 2146121005 : i32
    %20 = vector.broadcast %c2146121005_i32 : i32 to vector<16x128xi32>
    %21 = arith.muli %19, %20 : vector<16x128xi32>
    %c15_i32 = arith.constant 15 : i32
    %22 = vector.broadcast %c15_i32 : i32 to vector<16x128xi32>
    %23 = arith.shrsi %21, %22 : vector<16x128xi32>
    %c131071_i32 = arith.constant 131071 : i32
    %24 = vector.broadcast %c131071_i32 : i32 to vector<16x128xi32>
    %25 = arith.andi %23, %24 : vector<16x128xi32>
    %26 = arith.xori %21, %25 : vector<16x128xi32>
    %c-2073434485_i32 = arith.constant -2073434485 : i32
    %27 = vector.broadcast %c-2073434485_i32 : i32 to vector<16x128xi32>
    %28 = arith.muli %26, %27 : vector<16x128xi32>
    %c16_i32_0 = arith.constant 16 : i32
    %29 = vector.broadcast %c16_i32_0 : i32 to vector<16x128xi32>
    %30 = arith.shrsi %28, %29 : vector<16x128xi32>
    %c65535_i32_1 = arith.constant 65535 : i32
    %31 = vector.broadcast %c65535_i32_1 : i32 to vector<16x128xi32>
    %32 = arith.andi %30, %31 : vector<16x128xi32>
    %33 = arith.xori %28, %32 : vector<16x128xi32>
    %c8_i32 = arith.constant 8 : i32
    %34 = vector.broadcast %c8_i32 : i32 to vector<16x128xi32>
    %35 = arith.shrsi %33, %34 : vector<16x128xi32>
    %c16777215_i32 = arith.constant 16777215 : i32
    %36 = vector.broadcast %c16777215_i32 : i32 to vector<16x128xi32>
    %37 = arith.andi %35, %36 : vector<16x128xi32>
    %38 = arith.sitofp %37 : vector<16x128xi32> to vector<16x128xf32>
    %cst = arith.constant 5.000000e-01 : f32
    %39 = vector.broadcast %cst : f32 to vector<16x128xf32>
    %40 = arith.addf %38, %39 : vector<16x128xf32>
    %cst_2 = arith.constant 1.1920929E-7 : f32
    %41 = vector.broadcast %cst_2 : f32 to vector<16x128xf32>
    %42 = arith.mulf %40, %41 : vector<16x128xf32>
    %cst_3 = arith.constant 1.000000e+00 : f32
    %43 = vector.broadcast %cst_3 : f32 to vector<16x128xf32>
    %44 = arith.subf %42, %43 : vector<16x128xf32>
    %cst_4 = arith.constant 1.000000e+00 : f32
    %45 = vector.broadcast %cst_4 : f32 to vector<16x128xf32>
    %46 = arith.subf %45, %44 : vector<16x128xf32>
    %cst_5 = arith.constant 1.000000e+00 : f32
    %47 = vector.broadcast %cst_5 : f32 to vector<16x128xf32>
    %48 = arith.addf %47, %44 : vector<16x128xf32>
    %49 = arith.mulf %46, %48 : vector<16x128xf32>
    %50 = math.log %49 : vector<16x128xf32>
    %cst_6 = arith.constant 0.000000e+00 : f32
    %51 = vector.broadcast %cst_6 : f32 to vector<16x128xf32>
    %52 = arith.subf %51, %50 : vector<16x128xf32>
    %cst_7 = arith.constant 2.500000e+00 : f32
    %53 = vector.broadcast %cst_7 : f32 to vector<16x128xf32>
    %54 = arith.subf %52, %53 : vector<16x128xf32>
    %cst_8 = arith.constant 2.81022636E-8 : f32
    %55 = vector.broadcast %cst_8 : f32 to vector<16x128xf32>
    %56 = arith.mulf %55, %54 : vector<16x128xf32>
    %cst_9 = arith.constant 3.43273939E-7 : f32
    %57 = vector.broadcast %cst_9 : f32 to vector<16x128xf32>
    %58 = arith.addf %56, %57 : vector<16x128xf32>
    %59 = arith.mulf %58, %54 : vector<16x128xf32>
    %cst_10 = arith.constant -3.5233877E-6 : f32
    %60 = vector.broadcast %cst_10 : f32 to vector<16x128xf32>
    %61 = arith.addf %59, %60 : vector<16x128xf32>
    %62 = arith.mulf %61, %54 : vector<16x128xf32>
    %cst_11 = arith.constant -4.39150654E-6 : f32
    %63 = vector.broadcast %cst_11 : f32 to vector<16x128xf32>
    %64 = arith.addf %62, %63 : vector<16x128xf32>
    %65 = arith.mulf %64, %54 : vector<16x128xf32>
    %cst_12 = arith.constant 2.1858087E-4 : f32
    %66 = vector.broadcast %cst_12 : f32 to vector<16x128xf32>
    %67 = arith.addf %65, %66 : vector<16x128xf32>
    %68 = arith.mulf %67, %54 : vector<16x128xf32>
    %cst_13 = arith.constant -0.00125372503 : f32
    %69 = vector.broadcast %cst_13 : f32 to vector<16x128xf32>
    %70 = arith.addf %68, %69 : vector<16x128xf32>
    %71 = arith.mulf %70, %54 : vector<16x128xf32>
    %cst_14 = arith.constant -0.00417768164 : f32
    %72 = vector.broadcast %cst_14 : f32 to vector<16x128xf32>
    %73 = arith.addf %71, %72 : vector<16x128xf32>
    %74 = arith.mulf %73, %54 : vector<16x128xf32>
    %cst_15 = arith.constant 0.246640727 : f32
    %75 = vector.broadcast %cst_15 : f32 to vector<16x128xf32>
    %76 = arith.addf %74, %75 : vector<16x128xf32>
    %77 = arith.mulf %76, %54 : vector<16x128xf32>
    %cst_16 = arith.constant 1.50140941 : f32
    %78 = vector.broadcast %cst_16 : f32 to vector<16x128xf32>
    %79 = arith.addf %77, %78 : vector<16x128xf32>
    %80 = math.sqrt %52 : vector<16x128xf32>
    %cst_17 = arith.constant 3.000000e+00 : f32
    %81 = vector.broadcast %cst_17 : f32 to vector<16x128xf32>
    %82 = arith.subf %80, %81 : vector<16x128xf32>
    %cst_18 = arith.constant -2.00214257E-4 : f32
    %83 = vector.broadcast %cst_18 : f32 to vector<16x128xf32>
    %84 = arith.mulf %83, %82 : vector<16x128xf32>
    %cst_19 = arith.constant 1.00950558E-4 : f32
    %85 = vector.broadcast %cst_19 : f32 to vector<16x128xf32>
    %86 = arith.addf %84, %85 : vector<16x128xf32>
    %87 = arith.mulf %86, %82 : vector<16x128xf32>
    %cst_20 = arith.constant 0.00134934322 : f32
    %88 = vector.broadcast %cst_20 : f32 to vector<16x128xf32>
    %89 = arith.addf %87, %88 : vector<16x128xf32>
    %90 = arith.mulf %89, %82 : vector<16x128xf32>
    %cst_21 = arith.constant -0.00367342844 : f32
    %91 = vector.broadcast %cst_21 : f32 to vector<16x128xf32>
    %92 = arith.addf %90, %91 : vector<16x128xf32>
    %93 = arith.mulf %92, %82 : vector<16x128xf32>
    %cst_22 = arith.constant 0.00573950773 : f32
    %94 = vector.broadcast %cst_22 : f32 to vector<16x128xf32>
    %95 = arith.addf %93, %94 : vector<16x128xf32>
    %96 = arith.mulf %95, %82 : vector<16x128xf32>
    %cst_23 = arith.constant -0.0076224613 : f32
    %97 = vector.broadcast %cst_23 : f32 to vector<16x128xf32>
    %98 = arith.addf %96, %97 : vector<16x128xf32>
    %99 = arith.mulf %98, %82 : vector<16x128xf32>
    %cst_24 = arith.constant 0.00943887047 : f32
    %100 = vector.broadcast %cst_24 : f32 to vector<16x128xf32>
    %101 = arith.addf %99, %100 : vector<16x128xf32>
    %102 = arith.mulf %101, %82 : vector<16x128xf32>
    %cst_25 = arith.constant 1.00167406 : f32
    %103 = vector.broadcast %cst_25 : f32 to vector<16x128xf32>
    %104 = arith.addf %102, %103 : vector<16x128xf32>
    %105 = arith.mulf %104, %82 : vector<16x128xf32>
    %cst_26 = arith.constant 2.83297682 : f32
    %106 = vector.broadcast %cst_26 : f32 to vector<16x128xf32>
    %107 = arith.addf %105, %106 : vector<16x128xf32>
    %cst_27 = arith.constant 5.000000e+00 : f32
    %108 = vector.broadcast %cst_27 : f32 to vector<16x128xf32>
    %109 = arith.cmpf olt, %52, %108 : vector<16x128xf32>
    %110 = arith.select %109, %79, %107 : vector<16x128xi1>, vector<16x128xf32>
    %111 = arith.mulf %110, %44 : vector<16x128xf32>
    %cst_28 = arith.constant 1.41421354 : f32
    %112 = vector.broadcast %cst_28 : f32 to vector<16x128xf32>
    %113 = arith.mulf %112, %111 : vector<16x128xf32>
    %c0 = arith.constant 0 : index
    %c0_29 = arith.constant 0 : index
    %c0_30 = arith.constant 0 : index
    %114 = vector.load %arg3[%c0, %c0_29, %c0_30] : memref<1x16x128xf32, #tpu.memory_space<vmem>>, vector<1x16x128xf32>
    %115 = vector.shape_cast %114 : vector<1x16x128xf32> to vector<16x128xf32>
    %116 = vector.shape_cast %113 : vector<16x128xf32> to vector<1x16x128xf32>
    tpu.vector_store %arg3[%c0, %c0_29, %c0_30], %116 {strides = array<i32>} : memref<1x16x128xf32, #tpu.memory_space<vmem>>, vector<1x16x128xf32>,
    return
  }
  func.func @transform_0(%arg0: i32, %arg1: i32) -> i32 {
    %c0_i32 = arith.constant 0 : i32
    %c0_i32_0 = arith.constant 0 : i32
    return %c0_i32 : i32
  }
  func.func @transform_1(%arg0: i32, %arg1: i32) -> (i32, i32, i32) {
    %c0_i32 = arith.constant 0 : i32
    %c0_i32_0 = arith.constant 0 : i32
    return %arg0, %arg1, %c0_i32 : i32, i32, i32
  }
}

</mosaic_0001>

<llo_original>
// kernel: _env_step_batch.1
$region0: #{_env_step_batch.1}
  #allocation0 [shape = 'u32[]', space=smem, size = 0x4, offset = 0x4, fixed_abs, tag = 'smem constant byte address 0x4 - core index']
  #allocation1 [shape = 'u32[144,128]{1,0:T(1,128)}', space=vmem, size = 0x12000, scoped, tag = 'internal scratch']
  #allocation2 [shape = 's32[1]{0:T(128)S(6)}', space=smem, size = 0x200, scoped, tag = 'scoped memory for _env_step_batch.1']
  %s0 = inlined_call_operand.<no memory space> [shape: s32[1], index: 0, kind: input, shape index: {}]
  %s1 = inlined_call_operand.vmem [shape: f32[1,16,128], index: 1, kind: output, shape index: {}]
  %s2 = sld [smem:[#allocation0]]
  $region14: #{_env_step_batch.1} parent=0
    _
  %s4 = ssub.s32 1, %s2
  %s5 = scalar_select 0, %s4, %s2
  %6 = sst [smem:[#allocation2]] %s0
  // Predicated region
  $region2: #{_env_step_batch.1} parent=0 // pred_check
    _
  $region3: #{_env_step_batch.1} parent=0 // pred_check_branch
    %8 = sbr.rel (0) target = $region5
  $region4: #{_env_step_batch.1} parent=0 // pred_region
    _
  $region5: #{_env_step_batch.1} parent=0 // pred_fallthru
    _
  %v9 = vlaneseq
  %v10 = vshrl.u32 %v9, 7
  %v11 = vadd.s32 %v10, 8
  %v12 = vlaneseq
  %v13 = vand.u32 %v12, 127
  %s14 = smul.u32 0, 2048
  %v15 = vmul.u32 %v10, 128
  %v16 = vmul.u32 %v11, 128
  %v17 = vstv %s14
  %v18 = vadd.s32 %v17, %v15
  %v19 = vadd.s32 %v17, %v16
  %v20 = vadd.s32 %v18, %v13
  %v21 = vadd.s32 %v19, %v13
  %s22 = sld [smem:[#allocation2]]
  %s23 = smul.u32 %s22, 2654435769
  %s24 = smul.u32 0, 2246822519
  %s25 = sadd.s32 %s23, %s24
  %v26 = vstv %s25
  %v27 = vxor.u32 %v20, %v26
  %v28 = vxor.u32 %v21, %v26
  %v29 = vshra.s32 %v27, 16
  %v30 = vshra.s32 %v28, 16
  %v31 = vand.u32 %v29, 65535
  %v32 = vand.u32 %v30, 65535
  %v33 = vxor.u32 %v27, %v31
  %v34 = vxor.u32 %v28, %v32
  %v35 = vmul.u32 %v33, 2146121005
  %v36 = vmul.u32 %v34, 2146121005
  %v37 = vshra.s32 %v35, 15
  %v38 = vshra.s32 %v36, 15
  %v39 = vand.u32 %v37, 131071
  %v40 = vand.u32 %v38, 131071
  %v41 = vxor.u32 %v35, %v39
  %v42 = vxor.u32 %v36, %v40
  %v43 = vmul.u32 %v41, 2221532811
  %v44 = vmul.u32 %v42, 2221532811
  %v45 = vshra.s32 %v43, 16
  %v46 = vshra.s32 %v44, 16
  %v47 = vand.u32 %v45, 65535
  %v48 = vand.u32 %v46, 65535
  %v49 = vxor.u32 %v43, %v47
  %v50 = vxor.u32 %v44, %v48
  %v51 = vshra.s32 %v49, 8
  %v52 = vshra.s32 %v50, 8
  %v53 = vand.u32 %v51, 16777215
  %v54 = vand.u32 %v52, 16777215
  %v55 = vcvt.s32.f32 %v53
  %v56 = vcvt.s32.f32 %v54
  %v57 = vadd.f32 %v55, 0.5
  %v58 = vadd.f32 %v56, 0.5
  %v59 = vmul.f32 %v57, 1.1920929e-07
  %v60 = vmul.f32 %v58, 1.1920929e-07
  %v61 = vsub.f32 %v59, 1.0
  %v62 = vsub.f32 %v60, 1.0
  %v63 = vsub.f32 1.0, %v61
  %v64 = vsub.f32 1.0, %v62
  %v65 = vadd.f32 %v61, 1.0
  %v66 = vadd.f32 %v62, 1.0
  %v67 = vmul.f32 %v63, %v65
  %v68 = vmul.f32 %v64, %v66
  %v69 = vlog2.pop %v67
  %v70 = vmul.f32 %v69, 0.6931472
  %v71 = vlog2.pop %v68
  %v72 = vmul.f32 %v71, 0.6931472
  %v73 = vsub.f32 0.0, %v70
  %v74 = vsub.f32 0.0, %v72
  %v75 = vsub.f32 %v73, 2.5
  %v76 = vsub.f32 %v74, 2.5
  %v77 = vmul.f32 %v75, 2.8102264e-08
  %v78 = vmul.f32 %v76, 2.8102264e-08
  %v79 = vadd.f32 %v77, 3.4327394e-07
  %v80 = vadd.f32 %v78, 3.4327394e-07
  %v81 = vmul.f32 %v79, %v75
  %v82 = vmul.f32 %v80, %v76
  %v83 = vadd.f32 %v81, -3.5233877e-06
  %v84 = vadd.f32 %v82, -3.5233877e-06
  %v85 = vmul.f32 %v83, %v75
  %v86 = vmul.f32 %v84, %v76
  %v87 = vadd.f32 %v85, -4.3915065e-06
  %v88 = vadd.f32 %v86, -4.3915065e-06
  %v89 = vmul.f32 %v87, %v75
  %v90 = vmul.f32 %v88, %v76
  %v91 = vadd.f32 %v89, 0.00021858087
  %v92 = vadd.f32 %v90, 0.00021858087
  %v93 = vmul.f32 %v91, %v75
  %v94 = vmul.f32 %v92, %v76
  %v95 = vadd.f32 %v93, -0.001253725
  %v96 = vadd.f32 %v94, -0.001253725
  %v97 = vmul.f32 %v95, %v75
  %v98 = vmul.f32 %v96, %v76
  %v99 = vadd.f32 %v97, -0.0041776816
  %v100 = vadd.f32 %v98, -0.0041776816
  %v101 = vmul.f32 %v99, %v75
  %v102 = vmul.f32 %v100, %v76
  %v103 = vadd.f32 %v101, 0.24664073
  %v104 = vadd.f32 %v102, 0.24664073
  %v105 = vmul.f32 %v103, %v75
  %v106 = vmul.f32 %v104, %v76
  %v107 = vadd.f32 %v105, 1.5014094
  %v108 = vadd.f32 %v106, 1.5014094
  %v109 = vrsqrt.pop %v73
  %v110 = vmul.f32 %v73, %v109
  %vm111 = vcmp.eq.f32.partialorder %v73, inf
  %v112 = vsel %vm111, %v73, %v110
  %vm113 = vcmp.eq.f32.partialorder %v73, 0.0
  %v114 = vand.u32 %v73, 2147483648
  %v115 = vsel %vm113, %v114, %v112
  %v116 = vrsqrt.pop %v74
  %v117 = vmul.f32 %v74, %v116
  %vm118 = vcmp.eq.f32.partialorder %v74, inf
  %v119 = vsel %vm118, %v74, %v117
  %vm120 = vcmp.eq.f32.partialorder %v74, 0.0
  %v121 = vand.u32 %v74, 2147483648
  %v122 = vsel %vm120, %v121, %v119
  %v123 = vsub.f32 %v115, 3.0
  %v124 = vsub.f32 %v122, 3.0
  %v125 = vmul.f32 %v123, -0.00020021426
  %v126 = vmul.f32 %v124, -0.00020021426
  %v127 = vadd.f32 %v125, 0.00010095056
  %v128 = vadd.f32 %v126, 0.00010095056
  %v129 = vmul.f32 %v127, %v123
  %v130 = vmul.f32 %v128, %v124
  %v131 = vadd.f32 %v129, 0.0013493432
  %v132 = vadd.f32 %v130, 0.0013493432
  %v133 = vmul.f32 %v131, %v123
  %v134 = vmul.f32 %v132, %v124
  %v135 = vadd.f32 %v133, -0.0036734284
  %v136 = vadd.f32 %v134, -0.0036734284
  %v137 = vmul.f32 %v135, %v123
  %v138 = vmul.f32 %v136, %v124
  %v139 = vadd.f32 %v137, 0.0057395077
  %v140 = vadd.f32 %v138, 0.0057395077
  %v141 = vmul.f32 %v139, %v123
  %v142 = vmul.f32 %v140, %v124
  %v143 = vadd.f32 %v141, -0.0076224613
  %v144 = vadd.f32 %v142, -0.0076224613
  %v145 = vmul.f32 %v143, %v123
  %v146 = vmul.f32 %v144, %v124
  %v147 = vadd.f32 %v145, 0.0094388705
  %v148 = vadd.f32 %v146, 0.0094388705
  %v149 = vmul.f32 %v147, %v123
  %v150 = vmul.f32 %v148, %v124
  %v151 = vadd.f32 %v149, 1.001674
  %v152 = vadd.f32 %v150, 1.001674
  %v153 = vmul.f32 %v151, %v123
  %v154 = vmul.f32 %v152, %v124
  %v155 = vadd.f32 %v153, 2.8329768
  %v156 = vadd.f32 %v154, 2.8329768
  %vm157 = vcmp.lt.f32.partialorder %v73, 5.0
  %vm158 = vcmp.lt.f32.partialorder %v74, 5.0
  %v159 = vsel %vm157, %v107, %v155
  %v160 = vsel %vm158, %v108, %v156
  %v161 = vmul.f32 %v159, %v61
  %v162 = vmul.f32 %v160, %v62
  %v163 = vmul.f32 %v161, 1.4142135
  %v164 = vmul.f32 %v162, 1.4142135
  %165 = vst [vmem:[%s1] sm:$0xff] %v163
  %166 = vst [vmem:[%s1 + $0x8] sm:$0xff] %v164
  // Predicated region
  $region6: #{_env_step_batch.1} parent=0 // pred_check
    _
  $region7: #{_env_step_batch.1} parent=0 // pred_check_branch
    %168 = sbr.rel (0) target = $region9
  $region8: #{_env_step_batch.1} parent=0 // pred_region
    _
  $region9: #{_env_step_batch.1} parent=0 // pred_fallthru
    _
  // Predicated region
  $region10: #{_env_step_batch.1} parent=0 // pred_check
    _
  $region11: #{_env_step_batch.1} parent=0 // pred_check_branch
    %170 = sbr.rel (0) target = $region13
  $region12: #{_env_step_batch.1} parent=0 // pred_region
    _
  $region13: #{_env_step_batch.1} parent=0 // pred_fallthru
    _

</llo_original>
